<compile_context>
chip_gen: v7x
topology: tpu7x:2x2x1
jax: 0.10.0
libtpu: 0.0.40
codegen_flags: <defaults>
</compile_context>

<pallas_src>
import functools

import numpy as np
import jax
import jax.numpy as jnp
from jax.experimental import pallas as pl
from jax.experimental.pallas import tpu as pltpu

_LANE = 128
_MAX_ROW_TILE = 2048                 # packed rows per grid step (item 1)
_VMEM_BUDGET = 12 * 1024 * 1024      # conservative: fits v5e 16 MiB scoped default


# ----------------------------------------------------------------------------
# Deterministic synthetic hierarchy (replaces _load_class_hierarchy file I/O)
# ----------------------------------------------------------------------------
def build_hierarchy(num_fg_classes: int):
    """is_childs (C+1, C+1), is_parents (C, C) for a binary-tree hierarchy:
    foreground class i (i > 0) has parent (i - 1) // 2.  Satisfies the asserts
    in _load_class_hierarchy."""
    # TODO(synk): production code loads these matrices from hierarchy.json.
    C = num_fg_classes
    parent = np.full((C,), -1, dtype=np.int64)
    for i in range(1, C):
        parent[i] = (i - 1) // 2

    is_parents = np.zeros((C, C), dtype=np.float32)      # strict ancestors
    for i in range(C):
        p = parent[i]
        while p >= 0:
            is_parents[i, p] = 1.0
            p = parent[p]

    is_childs = np.zeros((C + 1, C + 1), dtype=np.float32)  # strict descendants
    is_childs[:C, :C] = is_parents.T

    assert (is_childs[:-1, :-1] * is_parents).sum() == 0
    assert is_childs[-1, :].sum() + is_childs[:, -1].sum() == 0
    return is_childs, is_parents


# ----------------------------------------------------------------------------
# Lane packing choice (item 4)
# ----------------------------------------------------------------------------
def _choose_packing(c1: int):
    """Return (c1p, pack): pack batch rows per 128-lane line, each padded to
    c1p class columns.  Only packs when C+1 <= 64 (small class vocabularies);
    larger vocabularies are already lane-dense."""
    if c1 > 64:
        return c1, 1
    for c1p in (16, 32, 64, 128):     # smallest divisor of 128 >= c1 (pack <= 8)
        if c1p >= c1:
            return c1p, _LANE // c1p
    return c1, 1


# ----------------------------------------------------------------------------
# Precompute fused constant RHS once (host-side, 0/1 data -> exact in bf16)
# ----------------------------------------------------------------------------
def prepare_hierarchy_constants(is_childs, is_parents, c1p: int, pack: int):
    """fused_rhs (LW, 2*half) bf16, LW = pack*c1p:
         columns [0, LW)            : block-diag(Ppad + I)        -> refined
         columns [half, half + LW)  : block-diag(1 - is_childs)   -> hierarchy_w
    Block-diagonal per packed sub-row so the matmul result stays in the packed
    layout; each output half is lane-aligned (half = round_up(LW, 128))."""
    is_childs = np.asarray(is_childs, np.float32)
    is_parents = np.asarray(is_parents, np.float32)
    c1 = is_childs.shape[0]
    c = c1 - 1
    lw = c1p * pack
    half = ((lw + _LANE - 1) // _LANE) * _LANE

    refine = np.zeros((c1p, c1p), np.float32)     # Ppad + I (folds the "+ onehot")
    refine[:c, :c] = is_parents
    refine[np.arange(c1), np.arange(c1)] += 1.0
    hwm = np.zeros((c1p, c1p), np.float32)        # 1 - is_childs
    hwm[:c1, :c1] = 1.0 - is_childs

    rhs = np.zeros((lw, 2 * half), np.float32)
    for j in range(pack):                         # block-diagonal copies
        r0 = j * c1p
        rhs[r0:r0 + c1p, r0:r0 + c1p] = refine
        rhs[r0:r0 + c1p, half + r0:half + r0 + c1p] = hwm
    return jnp.asarray(rhs, jnp.bfloat16), half


# ----------------------------------------------------------------------------
# Pallas kernel
# ----------------------------------------------------------------------------
def _hierarchy_loss_kernel(pred_ref, hot_ref, rhs_ref, out_ref, *, half):
    pred = pred_ref[...].astype(jnp.float32)       # (TB, LW) — bf16 pred upcast in-vreg
    tb, lw = pred.shape
    hot = hot_ref[...]                             # (TB, pack) int32 "hot lane" codes
    pack = hot.shape[1]

    # Packed one-hot: lane l of packed row r is hot iff l == hot[r, l // c1p].
    # Padded rows carry hot code -1 -> all-zero one-hot -> zero hierarchy weight.
    col = jax.lax.broadcasted_iota(jnp.int32, (tb, lw), 1)
    onehot = (col == hot[:, 0:1]).astype(jnp.float32)
    for j in range(1, pack):                       # static unroll, pack <= 8
        onehot = onehot + (col == hot[:, j:j + 1]).astype(jnp.float32)
    onehot = onehot.astype(jnp.bfloat16)           # 0/1 -> exact in bf16

    # Single MXU matmul against the resident block-diagonal constant:
    #   [refined | hierarchy_w] = onehot @ [(Ppad+I)_bd | (1-is_childs)_bd]
    res = jnp.dot(onehot, rhs_ref[...], preferred_element_type=jnp.float32)
    refined = res[:, :lw]
    hw = res[:, half:half + lw]

    # Stable BCE-with-logits in f32.  Padded rows/columns have pred == 0 (finite)
    # and hw == 0 exactly, so they contribute nothing — no in-kernel masking.
    bce = (jnp.maximum(pred, 0.0) - pred * refined
           + jnp.log(1.0 + jnp.exp(-jnp.abs(pred))))

    # Per-tile per-lane partial sum (items 2/6): no carried accumulator, no
    # per-step cross-lane reduce, grid axis fully parallel (v7x 2 TensorCores).
    out_ref[...] = jnp.sum(bce * hw, axis=0, keepdims=True).reshape(1, 1, lw)


# ----------------------------------------------------------------------------
# Wrapper
# ----------------------------------------------------------------------------
def hierarchy_loss(pred, target, fused_rhs, half, c1p, pack, loss_weight=1.0):
    """pred: (B, C+1) float32 or bfloat16; target: (B,) int in [0, C]."""
    if pred.size == 0:
        return jnp.zeros((), jnp.float32)

    b, c1 = pred.shape
    lw = c1p * pack
    assert fused_rhs.shape == (lw, 2 * half)

    # ---- row tiling (in packed rows), sized against the VMEM budget --------
    bp0 = -(-b // pack)
    rhs_bytes = int(fused_rhs.size) * fused_rhs.dtype.itemsize
    single_buffer_rhs = rhs_bytes > (2 << 20)      # item 3: only matters for big C
    rhs_bufs = 1 if single_buffer_rhs else 2
    pred_itemsize = pred.dtype.itemsize

    def vmem_need(t):
        return (2 * t * lw * pred_itemsize         # pred tile, double buffered
                + 2 * t * _LANE * 4                # hot codes (lane-padded in VMEM)
                + rhs_bufs * rhs_bytes             # resident constant RHS
                + (512 << 10))                     # out blocks + slack

    tb = min(bp0, _MAX_ROW_TILE)
    while tb > 8 and vmem_need(tb) > _VMEM_BUDGET:
        tb //= 2
    if tb < bp0:
        tb = max(8, (tb // 8) * 8)                 # tiled path: sublane-aligned blocks
        bp = -(-bp0 // tb) * tb
    else:
        tb = bp0                                   # single tile == full array dim
        bp = bp0
    b_pad = bp * pack
    grid = bp // tb

    # ---- host-side packing / padding (items 4 + 8a) ------------------------
    if (b_pad != b) or (c1p != c1):
        pred = jnp.pad(pred, ((0, b_pad - b), (0, c1p - c1)))   # zeros
    pred_packed = pred.reshape(bp, lw)

    idx = jnp.arange(b_pad, dtype=jnp.int32)
    tgt = jnp.pad(target.astype(jnp.int32), (0, b_pad - b))
    hot = jnp.where(idx < b, tgt + c1p * (idx % pack), -1).reshape(bp, pack)

    if single_buffer_rhs:
        rhs_spec = pl.BlockSpec((lw, 2 * half), lambda i: (0, 0),
                                pipeline_mode=pl.Buffered(1))
    else:
        rhs_spec = pl.BlockSpec((lw, 2 * half), lambda i: (0, 0))

    vmem_limit = int(min(max(2 * vmem_need(tb), 8 << 20), 48 << 20))
    flops = int(2 * bp * lw * (2 * half) + 10 * bp * lw)
    transcendentals = int(2 * bp * lw)
    bytes_accessed = int(bp * lw * pred_itemsize + bp * pack * 4
                         + rhs_bytes + grid * lw * 4)

    out = pl.pallas_call(
        functools.partial(_hierarchy_loss_kernel, half=half),
        out_shape=jax.ShapeDtypeStruct((grid, 1, lw), jnp.float32),
        grid_spec=pltpu.PrefetchScalarGridSpec(
            num_scalar_prefetch=0,
            grid=(grid,),
            in_specs=[
                pl.BlockSpec((tb, lw), lambda i: (i, 0)),    # packed pred tile
                pl.BlockSpec((tb, pack), lambda i: (i, 0)),  # hot-lane codes
                rhs_spec,                                    # resident constant RHS
            ],
            out_specs=pl.BlockSpec((1, 1, lw), lambda i: (i, 0, 0)),
        ),
        compiler_params=pltpu.CompilerParams(
            dimension_semantics=("parallel",),               # item 2: v7x megacore
            vmem_limit_bytes=vmem_limit),
        cost_estimate=pl.CostEstimate(flops=flops,
                                      transcendentals=transcendentals,
                                      bytes_accessed=bytes_accessed),
    )(pred_packed, hot, fused_rhs)

    # Final tiny reduction + scale in the wrapper (negligible, keeps the grid
    # dependency-free and loss_weight out of the compiled kernel).
    return (loss_weight / b) * jnp.sum(out)


# ----------------------------------------------------------------------------
# Pure-JAX reference (independent implementation, for the sanity check)
# ----------------------------------------------------------------------------
def hierarchy_loss_ref(pred, target, is_childs, is_parents, loss_weight=1.0):
    B, C1 = pred.shape
    C = C1 - 1
    pred = pred.astype(jnp.float32)
    onehot = jax.nn.one_hot(target, C1, dtype=jnp.float32)
    refined = onehot.at[:, :C].set(onehot[:, :C] @ jnp.asarray(is_parents)
                                   + onehot[:, :C])
    bce = (jnp.maximum(pred, 0.0) - pred * refined
           + jnp.log1p(jnp.exp(-jnp.abs(pred))))
    hw = (1.0 - jnp.asarray(is_childs))[target]
    return loss_weight * jnp.sum(bce * hw) / B


# ----------------------------------------------------------------------------
if __name__ == "__main__":
    B = 8            # number of predictions (ROIs)
    C = 31           # foreground classes; index C == background
    C1 = C + 1

    is_childs_np, is_parents_np = build_hierarchy(C)
    c1p, pack = _choose_packing(C1)                       # -> c1p=32, pack=4
    fused_rhs, half = prepare_hierarchy_constants(is_childs_np, is_parents_np,
                                                  c1p, pack)

    key = jax.random.PRNGKey(0)
    kp, kt = jax.random.split(key)
    pred = jax.random.normal(kp, (B, C1), dtype=jnp.float32)
    target = jax.random.randint(kt, (B,), 0, C1, dtype=jnp.int32)

    out = hierarchy_loss(pred, target, fused_rhs, half, c1p, pack, loss_weight=1.0)
    out = jax.block_until_ready(out)
    ref = hierarchy_loss_ref(pred, target, jnp.asarray(is_childs_np),
                             jnp.asarray(is_parents_np), loss_weight=1.0)
    np.testing.assert_allclose(np.asarray(out), np.asarray(ref),
                               rtol=1e-4, atol=1e-4)

    # Second check: ragged batch (exercises the pad-to-pack path) + bf16 pred.
    B2 = 10
    pred2 = jax.random.normal(kp, (B2, C1), dtype=jnp.bfloat16)
    target2 = jax.random.randint(kt, (B2,), 0, C1, dtype=jnp.int32)
    out2 = jax.block_until_ready(
        hierarchy_loss(pred2, target2, fused_rhs, half, c1p, pack, loss_weight=0.5))
    ref2 = hierarchy_loss_ref(pred2.astype(jnp.float32), target2,
                              jnp.asarray(is_childs_np), jnp.asarray(is_parents_np),
                              loss_weight=0.5)
    np.testing.assert_allclose(np.asarray(out2), np.asarray(ref2),
                               rtol=1e-3, atol=1e-3)

    print("KERNEL_OK")
</pallas_src>

<mosaic_0001>
module attributes {stable_mosaic.version = 11 : i64} {
  func.func @_hierarchy_loss_kernel(%arg0: i32, %arg1: memref<2x128xf32, #tpu.memory_space<vmem>>, %arg2: memref<2x4xi32, #tpu.memory_space<vmem>>, %arg3: memref<128x256xbf16, #tpu.memory_space<vmem>>, %arg4: memref<1x1x128xf32, #tpu.memory_space<vmem>>) attributes {dimension_semantics = [#tpu.dimension_semantics<parallel>], iteration_bounds = array<i64: 1>, scalar_prefetch = 0 : i64, scratch_operands = 0 : i64, tpu.core_type = #tpu.core_type<tc>, window_params = [{transform_indices = @transform_0, window_bounds = array<i64: 2, 128>}, {transform_indices = @transform_1, window_bounds = array<i64: 2, 4>}, {pipeline_mode = #tpu.pipeline_mode<synchronous>, transform_indices = @transform_2, window_bounds = array<i64: 128, 256>}, {transform_indices = @transform_3, window_bounds = array<i64: 1, 1, 128>}]} {
    %c0 = arith.constant 0 : index
    %c0_0 = arith.constant 0 : index
    %0 = vector.load %arg1[%c0, %c0_0] : memref<2x128xf32, #tpu.memory_space<vmem>>, vector<2x128xf32>
    %c0_1 = arith.constant 0 : index
    %c0_2 = arith.constant 0 : index
    %1 = vector.load %arg2[%c0_1, %c0_2] : memref<2x4xi32, #tpu.memory_space<vmem>>, vector<2x4xi32>
    %2 = tpu.iota {dimensions = array<i32: 1>} : vector<2x128xi32>
    %3 = vector.extract_strided_slice %1 {offsets = [0, 0], sizes = [2, 1], strides = [1, 1]} : vector<2x4xi32> to vector<2x1xi32>
    %4 = vector.broadcast %3 : vector<2x1xi32> to vector<2x128xi32>
    %5 = arith.cmpi eq, %2, %4 : vector<2x128xi32>
    %6 = arith.extui %5 : vector<2x128xi1> to vector<2x128xi32>
    %7 = arith.sitofp %6 : vector<2x128xi32> to vector<2x128xf32>
    %8 = vector.extract_strided_slice %1 {offsets = [0, 1], sizes = [2, 1], strides = [1, 1]} : vector<2x4xi32> to vector<2x1xi32>
    %9 = vector.broadcast %8 : vector<2x1xi32> to vector<2x128xi32>
    %10 = arith.cmpi eq, %2, %9 : vector<2x128xi32>
    %11 = arith.extui %10 : vector<2x128xi1> to vector<2x128xi32>
    %12 = arith.sitofp %11 : vector<2x128xi32> to vector<2x128xf32>
    %13 = arith.addf %7, %12 : vector<2x128xf32>
    %14 = vector.extract_strided_slice %1 {offsets = [0, 2], sizes = [2, 1], strides = [1, 1]} : vector<2x4xi32> to vector<2x1xi32>
    %15 = vector.broadcast %14 : vector<2x1xi32> to vector<2x128xi32>
    %16 = arith.cmpi eq, %2, %15 : vector<2x128xi32>
    %17 = arith.extui %16 : vector<2x128xi1> to vector<2x128xi32>
    %18 = arith.sitofp %17 : vector<2x128xi32> to vector<2x128xf32>
    %19 = arith.addf %13, %18 : vector<2x128xf32>
    %20 = vector.extract_strided_slice %1 {offsets = [0, 3], sizes = [2, 1], strides = [1, 1]} : vector<2x4xi32> to vector<2x1xi32>
    %21 = vector.broadcast %20 : vector<2x1xi32> to vector<2x128xi32>
    %22 = arith.cmpi eq, %2, %21 : vector<2x128xi32>
    %23 = arith.extui %22 : vector<2x128xi1> to vector<2x128xi32>
    %24 = arith.sitofp %23 : vector<2x128xi32> to vector<2x128xf32>
    %25 = arith.addf %19, %24 : vector<2x128xf32>
    %26 = arith.truncf %25 : vector<2x128xf32> to vector<2x128xbf16>
    %c0_3 = arith.constant 0 : index
    %c0_4 = arith.constant 0 : index
    %27 = vector.load %arg3[%c0_3, %c0_4] : memref<128x256xbf16, #tpu.memory_space<vmem>>, vector<128x256xbf16>
    %cst = arith.constant dense<0.000000e+00> : vector<2x256xf32>
    %28 = tpu.matmul %26, %27, %cst {dimension_numbers = #tpu.dot_dimension_numbers<[1], [0], [0], [1], [0, 0, 1, 1], [], []>} : vector<2x128xbf16>, vector<128x256xbf16>, vector<2x256xf32> -> vector<2x256xf32>
    %29 = vector.extract_strided_slice %28 {offsets = [0, 0], sizes = [2, 128], strides = [1, 1]} : vector<2x256xf32> to vector<2x128xf32>
    %30 = vector.extract_strided_slice %28 {offsets = [0, 128], sizes = [2, 128], strides = [1, 1]} : vector<2x256xf32> to vector<2x128xf32>
    %cst_5 = arith.constant 0.000000e+00 : f32
    %31 = vector.broadcast %cst_5 : f32 to vector<2x128xf32>
    %32 = arith.maximumf %0, %31 : vector<2x128xf32>
    %33 = arith.mulf %0, %29 : vector<2x128xf32>
    %34 = arith.subf %32, %33 : vector<2x128xf32>
    %35 = math.absf %0 : vector<2x128xf32>
    %cst_6 = arith.constant 0.000000e+00 : f32
    %36 = vector.broadcast %cst_6 : f32 to vector<2x128xf32>
    %37 = arith.subf %36, %35 : vector<2x128xf32>
    %38 = math.exp %37 : vector<2x128xf32>
    %cst_7 = arith.constant 1.000000e+00 : f32
    %39 = vector.broadcast %cst_7 : f32 to vector<2x128xf32>
    %40 = arith.addf %39, %38 : vector<2x128xf32>
    %41 = math.log %40 : vector<2x128xf32>
    %42 = arith.addf %34, %41 : vector<2x128xf32>
    %43 = arith.mulf %42, %30 : vector<2x128xf32>
    %cst_8 = arith.constant dense<0.000000e+00> : vector<128xf32>
    %44 = vector.multi_reduction <add>, %43, %cst_8 [0] : vector<2x128xf32> to vector<128xf32>
    %45 = vector.shape_cast %44 : vector<128xf32> to vector<1x128xf32>
    %46 = vector.shape_cast %45 : vector<1x128xf32> to vector<1x1x128xf32>
    %c0_9 = arith.constant 0 : index
    %c0_10 = arith.constant 0 : index
    %c0_11 = arith.constant 0 : index
    %47 = vector.load %arg4[%c0_9, %c0_10, %c0_11] : memref<1x1x128xf32, #tpu.memory_space<vmem>>, vector<1x1x128xf32>
    tpu.vector_store %arg4[%c0_9, %c0_10, %c0_11], %46 {strides = array<i32>} : memref<1x1x128xf32, #tpu.memory_space<vmem>>, vector<1x1x128xf32>,
    return
  }
  func.func @transform_0(%arg0: i32) -> (i32, i32) {
    %c0_i32 = arith.constant 0 : i32
    %c0_i32_0 = arith.constant 0 : i32
    return %arg0, %c0_i32 : i32, i32
  }
  func.func @transform_1(%arg0: i32) -> (i32, i32) {
    %c0_i32 = arith.constant 0 : i32
    %c0_i32_0 = arith.constant 0 : i32
    return %arg0, %c0_i32 : i32, i32
  }
  func.func @transform_2(%arg0: i32) -> (i32, i32) {
    %c0_i32 = arith.constant 0 : i32
    %c0_i32_0 = arith.constant 0 : i32
    %c0_i32_1 = arith.constant 0 : i32
    return %c0_i32, %c0_i32_0 : i32, i32
  }
  func.func @transform_3(%arg0: i32) -> (i32, i32, i32) {
    %c0_i32 = arith.constant 0 : i32
    %c0_i32_0 = arith.constant 0 : i32
    %c0_i32_1 = arith.constant 0 : i32
    return %arg0, %c0_i32, %c0_i32_0 : i32, i32, i32
  }
}

</mosaic_0001>

<llo_original>
// kernel: tpu_custom_call.1
$region0: #{tpu_custom_call.1}
  #allocation0 [shape = 'u32[]', space=smem, size = 0x4, offset = 0x4, fixed_abs, tag = 'smem constant byte address 0x4 - core index']
  #allocation1 [shape = 'u32[144,128]{1,0:T(1,128)}', space=vmem, size = 0x12000, scoped, tag = 'internal scratch']
  %s0 = inlined_call_operand.hbm [shape: f32[2,128], index: 0, kind: input, shape index: {}]
  %s1 = inlined_call_operand.vmem [shape: s32[2,4], index: 1, kind: input, shape index: {}]
  %s2 = inlined_call_operand.hbm [shape: bf16[128,256], index: 2, kind: input, shape index: {}]
  %s3 = inlined_call_operand.hbm [shape: f32[1,1,128], index: 3, kind: output, shape index: {}]
  %s4 = sld [smem:[#allocation0]]
  $region30: #{tpu_custom_call.1} parent=0
    _
  %s6 = ssub.s32 1, %s4
  %s7 = scalar_select 0, %s6, %s4
  $region1: #{tpu_custom_call.1} parent=0
    #allocation2 [shape = 'u8[1024]{0}', space=vmem, size = 0x400, scoped, tag = 'input window, operand 0, single buffered']
    #allocation3 [shape = 's32[1]{0}', space=sflag, size = 0x4, scoped, tag = 'scoped memory for tpu_custom_call.1']
    #allocation4 [shape = 's32[1]{0}', space=sflag, size = 0x4, scoped, tag = 'scoped memory for tpu_custom_call.1']
    #allocation5 [shape = 'u8[65536]{0}', space=vmem, size = 0x10000, scoped, tag = 'input window, operand 2, single buffered']
    #allocation6 [shape = 's32[1]{0}', space=sflag, size = 0x4, scoped, tag = 'scoped memory for tpu_custom_call.1']
    #allocation7 [shape = 'u8[512]{0}', space=vmem, size = 0x400, scoped, tag = 'output window, operand 0, single buffered']
    %8 = vsyncpa [#allocation3], 0
    %9 = vsyncpa [#allocation6], 0
    %10 = vsyncpa [#allocation4], 0
    // Predicated region
    $region2: #{tpu_custom_call.1} parent=1 // pred_check
      _
    $region3: #{tpu_custom_call.1} parent=1 // pred_check_branch
      %12 = sbr.rel (0) target = $region5
    $region4: #{tpu_custom_call.1} parent=1 // pred_region
      %s14 = ssub.s32 32, 32
      %15 = vsyncadd [#allocation3], %s14
      %s17 = sshll.u32 [#allocation2], 4
      %s18 = int_to_ptr.vmem [resolvable:$true] %s17
      %20 = dma.hbm_to_vmem [thread:$0]  %s0, 32, %s18, [#allocation3]
    $region5: #{tpu_custom_call.1} parent=1 // pred_fallthru
      _
    // Predicated region
    $region6: #{tpu_custom_call.1} parent=1 // pred_check
      _
    $region7: #{tpu_custom_call.1} parent=1 // pred_check_branch
      %22 = sbr.rel (0) target = $region9
    $region8: #{tpu_custom_call.1} parent=1 // pred_region
      _
    $region9: #{tpu_custom_call.1} parent=1 // pred_fallthru
      _
    // Predicated region
    $region10: #{tpu_custom_call.1} parent=1 // pred_check
      _
    $region11: #{tpu_custom_call.1} parent=1 // pred_check_branch
      %24 = sbr.rel (0) target = $region13
    $region12: #{tpu_custom_call.1} parent=1 // pred_region
      %s26 = ssub.s32 2048, 2048
      %27 = vsyncadd [#allocation6], %s26
      %s28 = sshll.u32 [#allocation5], 4
      %s29 = int_to_ptr.vmem [resolvable:$true] %s28
      %34 = dma.hbm_to_vmem [thread:$0]  %s2, 2048, %s29, [#allocation6], 128, 128, 8
    $region13: #{tpu_custom_call.1} parent=1 // pred_fallthru
      _
    // Predicated region
    $region14: #{tpu_custom_call.1} parent=1 // pred_check
      _
    $region15: #{tpu_custom_call.1} parent=1 // pred_check_branch
      %36 = sbr.rel (0) target = $region17
    $region16: #{tpu_custom_call.1} parent=1 // pred_region
      %37 = dma.done [#allocation3], 32
    $region17: #{tpu_custom_call.1} parent=1 // pred_fallthru
      _
    // Predicated region
    $region18: #{tpu_custom_call.1} parent=1 // pred_check
      _
    $region19: #{tpu_custom_call.1} parent=1 // pred_check_branch
      %39 = sbr.rel (0) target = $region21
    $region20: #{tpu_custom_call.1} parent=1 // pred_region
      %40 = dma.done [#allocation6], 2048
    $region21: #{tpu_custom_call.1} parent=1 // pred_fallthru
      _
    %v42 = vld [vmem:[#allocation2] sm:$0x3]
    %v43 = vld [vmem:[%s1] sm:$0x3]
    %v44 = vlaneseq
    %v45 = vand.u32 %v44, 127
    %46 = vset.pattern.permute.xlu0 0
    %47 = vperm.xlu0 %46, %v43
    %v48 = vpop.permute.xlu0 %47
    %vm49 = vcmp.eq.s32.totalorder %v45, %v48
    %v50 = vsel %vm49, 1, 0
    %v51 = vcvt.s32.f32 %v50
    %52 = vset.pattern.permute.xlu0 1
    %53 = vperm.xlu0 %52, %v43
    %v54 = vpop.permute.xlu0 %53
    %vm55 = vcmp.eq.s32.totalorder %v45, %v54
    %v56 = vsel %vm55, 1, 0
    %v57 = vcvt.s32.f32 %v56
    %v58 = vadd.f32 %v51, %v57
    %59 = vset.pattern.permute.xlu0 2
    %60 = vperm.xlu0 %59, %v43
    %v61 = vpop.permute.xlu0 %60
    %vm62 = vcmp.eq.s32.totalorder %v45, %v61
    %v63 = vsel %vm62, 1, 0
    %v64 = vcvt.s32.f32 %v63
    %v65 = vadd.f32 %v58, %v64
    %66 = vset.pattern.permute.xlu0 3
    %67 = vperm.xlu0 %66, %v43
    %v68 = vpop.permute.xlu0 %67
    %vm69 = vcmp.eq.s32.totalorder %v45, %v68
    %v70 = vsel %vm69, 1, 0
    %v71 = vcvt.s32.f32 %v70
    %v72 = vadd.f32 %v65, %v71
    %v73 = vpack.c.bf16 %v72, %v72
    %v74 = vld [vmem:[#allocation5] sm:$0xff]
    %v75 = vld [vmem:[#allocation5 + $0x8] sm:$0xff]
    %v76 = vld [vmem:[#allocation5 + $0x10] sm:$0xff]
    %v77 = vld [vmem:[#allocation5 + $0x18] sm:$0xff]
    %v78 = vld [vmem:[#allocation5 + $0x20] sm:$0xff]
    %v79 = vld [vmem:[#allocation5 + $0x28] sm:$0xff]
    %v80 = vld [vmem:[#allocation5 + $0x30] sm:$0xff]
    %v81 = vld [vmem:[#allocation5 + $0x38] sm:$0xff]
    %v82 = vld [vmem:[#allocation5 + $0x40] sm:$0xff]
    %v83 = vld [vmem:[#allocation5 + $0x48] sm:$0xff]
    %v84 = vld [vmem:[#allocation5 + $0x50] sm:$0xff]
    %v85 = vld [vmem:[#allocation5 + $0x58] sm:$0xff]
    %v86 = vld [vmem:[#allocation5 + $0x60] sm:$0xff]
    %v87 = vld [vmem:[#allocation5 + $0x68] sm:$0xff]
    %v88 = vld [vmem:[#allocation5 + $0x70] sm:$0xff]
    %v89 = vld [vmem:[#allocation5 + $0x78] sm:$0xff]
    %v106 = vunpack.c.l.b16 %v74
    %v107 = vunpack.c.h.b16 %v74
    %v108 = vunpack.c.l.b16 %v75
    %v109 = vunpack.c.h.b16 %v75
    %v110 = vunpack.c.l.b16 %v76
    %v111 = vunpack.c.h.b16 %v76
    %v112 = vunpack.c.l.b16 %v77
    %v113 = vunpack.c.h.b16 %v77
    %v114 = vunpack.c.l.b16 %v78
    %v115 = vunpack.c.h.b16 %v78
    %v116 = vunpack.c.l.b16 %v79
    %v117 = vunpack.c.h.b16 %v79
    %v118 = vunpack.c.l.b16 %v80
    %v119 = vunpack.c.h.b16 %v80
    %v120 = vunpack.c.l.b16 %v81
    %v121 = vunpack.c.h.b16 %v81
    %v122 = vunpack.c.l.b16 %v82
    %v123 = vunpack.c.h.b16 %v82
    %v124 = vunpack.c.l.b16 %v83
    %v125 = vunpack.c.h.b16 %v83
    %v126 = vunpack.c.l.b16 %v84
    %v127 = vunpack.c.h.b16 %v84
    %v128 = vunpack.c.l.b16 %v85
    %v129 = vunpack.c.h.b16 %v85
    %v130 = vunpack.c.l.b16 %v86
    %v131 = vunpack.c.h.b16 %v86
    %v132 = vunpack.c.l.b16 %v87
    %v133 = vunpack.c.h.b16 %v87
    %v134 = vunpack.c.l.b16 %v88
    %v135 = vunpack.c.h.b16 %v88
    %v136 = vunpack.c.l.b16 %v89
    %v137 = vunpack.c.h.b16 %v89
    %v138 = vpack.c.b16 %v108, %v106
    %v139 = vpack.c.b16 %v109, %v107
    %v140 = vpack.c.b16 %v112, %v110
    %v141 = vpack.c.b16 %v113, %v111
    %v142 = vpack.c.b16 %v116, %v114
    %v143 = vpack.c.b16 %v117, %v115
    %v144 = vpack.c.b16 %v120, %v118
    %v145 = vpack.c.b16 %v121, %v119
    %v146 = vpack.c.b16 %v124, %v122
    %v147 = vpack.c.b16 %v125, %v123
    %v148 = vpack.c.b16 %v128, %v126
    %v149 = vpack.c.b16 %v129, %v127
    %v150 = vpack.c.b16 %v132, %v130
    %v151 = vpack.c.b16 %v133, %v131
    %v152 = vpack.c.b16 %v136, %v134
    %v153 = vpack.c.b16 %v137, %v135
    %170 = vmatprep.subr.bf16.mxu0 %v139
    %171 = vmatpush1.bf16.msra.mxu0 %v138
    %172 = vmatprep.subr.bf16.mxu0 %v141
    %173 = vmatpush1.bf16.msra.mxu0 %v140
    %174 = vmatprep.subr.bf16.mxu0 %v143
    %175 = vmatpush1.bf16.msra.mxu0 %v142
    %176 = vmatprep.subr.bf16.mxu0 %v145
    %177 = vmatpush1.bf16.msra.mxu0 %v144
    %178 = vmatprep.subr.bf16.mxu0 %v147
    %179 = vmatpush1.bf16.msra.mxu0 %v146
    %180 = vmatprep.subr.bf16.mxu0 %v149
    %181 = vmatpush1.bf16.msra.mxu0 %v148
    %182 = vmatprep.subr.bf16.mxu0 %v151
    %183 = vmatpush1.bf16.msra.mxu0 %v150
    %184 = vmatprep.subr.bf16.mxu0 %v153
    %185 = vmatpush1.bf16.msra.mxu0 %v152
    %186 = vmatprep.subr.bf16.mxu0 0
    %187 = vmatpush1.bf16.msra.mxu0 0
    %188 = vmatprep.subr.bf16.mxu0 0
    %189 = vmatpush1.bf16.msra.mxu0 0
    %190 = vmatprep.subr.bf16.mxu0 0
    %191 = vmatpush1.bf16.msra.mxu0 0
    %192 = vmatprep.subr.bf16.mxu0 0
    %193 = vmatpush1.bf16.msra.mxu0 0
    %194 = vmatprep.subr.bf16.mxu0 0
    %195 = vmatpush1.bf16.msra.mxu0 0
    %196 = vmatprep.subr.bf16.mxu0 0
    %197 = vmatpush1.bf16.msra.mxu0 0
    %198 = vmatprep.subr.bf16.mxu0 0
    %199 = vmatpush1.bf16.msra.mxu0 0
    %200 = vmatprep.subr.bf16.mxu0 0
    %201 = vmatpush1.bf16.msra.mxu0 0
    %202 = vmatprep.mubr.bf16.mxu0 0
    %203 = vmatmul.mubr.bf16.gmra.mrb[0].mxu0 %v73
    %v204 = vpop.f32.mrb[0].mxu0
    %v205 = vadd.f32 0.0, %v204
    %v206 = vpop.f32.mrb[0].mxu0
    %v207 = vadd.f32 0.0, %v206
    %v208 = vpop.f32.mrb[0].mxu0
    %v209 = vpop.f32.mrb[0].mxu0
    %210 = vdwg.mxu0
    %v211 = vmax.f32 %v42, 0.0
    %v212 = vmul.f32 %v42, %v205
    %v213 = vsub.f32 %v211, %v212
    %v214 = vand.u32 2147483647, %v42
    %v215 = vsub.f32 0.0, %v214
    %v216 = vmul.f32 %v215, 1.442695
    %v217 = vpow.pop %v216
    %v218 = vadd.f32 %v217, 1.0
    %v219 = vlog2.pop %v218
    %v220 = vmul.f32 %v219, 0.6931472
    %v221 = vadd.f32 %v213, %v220
    %v222 = vmul.f32 %v221, %v207
    %vm223 = vcmask 1041408
    %v224 = vsel %vm223, %v222, 0.0
    %v225 = vrot.slane %v224, 4
    %v226 = vadd.f32 %v224, %v225
    %v227 = vrot.slane %v226, 2
    %v228 = vadd.f32 %v226, %v227
    %v229 = vrot.slane %v228, 1
    %v230 = vadd.f32 %v228, %v229
    %231 = vst [vmem:[#allocation7] sm:$0x1] %v230
    // Predicated region
    $region22: #{tpu_custom_call.1} parent=1 // pred_check
      _
    $region23: #{tpu_custom_call.1} parent=1 // pred_check_branch
      %233 = sbr.rel (0) target = $region25
    $region24: #{tpu_custom_call.1} parent=1 // pred_region
      %s235 = ssub.s32 16, 16
      %236 = vsyncadd [#allocation4], %s235
      %s238 = sshll.u32 [#allocation7], 4
      %s239 = int_to_ptr.vmem [resolvable:$true] %s238
      %241 = dma.vmem_to_hbm [thread:$0]  %s239, 16, %s3, [#allocation4]
    $region25: #{tpu_custom_call.1} parent=1 // pred_fallthru
      _
    // Predicated region
    $region26: #{tpu_custom_call.1} parent=1 // pred_check
      _
    $region27: #{tpu_custom_call.1} parent=1 // pred_check_branch
      %243 = sbr.rel (0) target = $region29
    $region28: #{tpu_custom_call.1} parent=1 // pred_region
      %244 = dma.done [#allocation4], 16
    $region29: #{tpu_custom_call.1} parent=1 // pred_fallthru
      _
    %245 = vsyncpa [#allocation3], 1
    %246 = vsyncpa [#allocation6], 1
    %247 = vsyncpa [#allocation4], 1

</llo_original>
